<compile_context>
chip_gen: v6e
topology: v6e:2x2x1
jax: 0.10.0
libtpu: 0.0.40
codegen_flags: <defaults>
</compile_context>

<pallas_src>
import math

import jax
import jax.numpy as jnp
from jax.experimental import pallas as pl
from jax.experimental.pallas import tpu as pltpu


def _build_embedding(num_steps, dim):
    # matches torch: steps[:,None] * 10**(arange(dim)/(dim-1)*4)[None,:]; cat(sin, cos)
    steps = jnp.arange(num_steps, dtype=jnp.float32)[:, None]
    frequencies = 10.0 ** (jnp.arange(dim, dtype=jnp.float32) / (dim - 1) * 4.0)[None, :]
    table = steps * frequencies
    return jnp.concatenate([jnp.sin(table), jnp.cos(table)], axis=1)  # (num_steps, 2*dim)


def _round_up(n, m):
    return ((n + m - 1) // m) * m


def _silu(h):
    return h * jax.nn.sigmoid(h)


_VMEM = pl.BlockSpec(memory_space=pltpu.MemorySpace.VMEM)
_SMEM = pl.BlockSpec(memory_space=pltpu.MemorySpace.SMEM)


# ---------------------------------------------------------------------------
# Kernels
# ---------------------------------------------------------------------------

def _project_table_kernel(emb_ref, w1_ref, b1_ref, w2_ref, b2_ref, o_ref):
    # emb block: (rows, E) f32, w1: (E, P), w2: (P, P), biases: (1, P)
    h = jnp.dot(emb_ref[...], w1_ref[...], preferred_element_type=jnp.float32) + b1_ref[...]
    h = _silu(h)
    h = jnp.dot(h, w2_ref[...], preferred_element_type=jnp.float32) + b2_ref[...]
    h = _silu(h)
    o_ref[...] = h.astype(o_ref.dtype)


def _fused_forward_kernel(steps_ref, emb_ref, w1_ref, b1_ref, w2_ref, b2_ref,
                          o_ref, x_scratch):
    # steps: SMEM (B,) i32; emb: VMEM (Npad, E) f32; w*: bf16 (or f32); b*: (1, P) f32.
    batch = o_ref.shape[0]
    # SMEM-indexed row gather, fully unrolled over the small static batch.
    # No one-hot / iota / compare work, no MXU push for the gather.
    for i in range(batch):
        x_scratch[pl.ds(i, 1), :] = emb_ref[pl.ds(steps_ref[i], 1), :]
    x = x_scratch[...]
    # bf16 operands on the MXU (single pass), f32 accumulate; bias + SiLU in f32.
    h = jnp.dot(x.astype(w1_ref.dtype), w1_ref[...],
                preferred_element_type=jnp.float32) + b1_ref[...]
    h = _silu(h)
    h = jnp.dot(h.astype(w2_ref.dtype), w2_ref[...],
                preferred_element_type=jnp.float32) + b2_ref[...]
    h = _silu(h)
    o_ref[...] = h.astype(o_ref.dtype)


# ---------------------------------------------------------------------------
# Wrappers
# ---------------------------------------------------------------------------

def precompute_projected_table(embedding_padded, w1, b1, w2, b2):
    """One-time: run the 2x Linear+SiLU over every (padded) embedding row."""
    n_pad, emb_dim = embedding_padded.shape
    proj_dim = w2.shape[1]
    # Two row-blocks so v7x's 2 TensorCores each take half ("parallel");
    # the weights use a constant index_map so they are only DMA'd once.
    block_rows = n_pad // 2 if (n_pad >= 16 and (n_pad // 2) % 8 == 0) else n_pad
    grid = (n_pad // block_rows,)
    cost = pl.CostEstimate(
        flops=2 * n_pad * emb_dim * proj_dim + 2 * n_pad * proj_dim * proj_dim,
        transcendentals=2 * n_pad * proj_dim,
        bytes_accessed=4 * (n_pad * emb_dim + emb_dim * proj_dim + proj_dim
                            + proj_dim * proj_dim + proj_dim + n_pad * proj_dim))
    return pl.pallas_call(
        _project_table_kernel,
        out_shape=jax.ShapeDtypeStruct((n_pad, proj_dim), jnp.float32),
        grid=grid,
        in_specs=[pl.BlockSpec((block_rows, emb_dim), lambda i: (i, 0)),
                  pl.BlockSpec((emb_dim, proj_dim), lambda i: (0, 0)),
                  pl.BlockSpec((1, proj_dim), lambda i: (0, 0)),
                  pl.BlockSpec((proj_dim, proj_dim), lambda i: (0, 0)),
                  pl.BlockSpec((1, proj_dim), lambda i: (0, 0))],
        out_specs=pl.BlockSpec((block_rows, proj_dim), lambda i: (i, 0)),
        compiler_params=pltpu.CompilerParams(dimension_semantics=("parallel",)),
        cost_estimate=cost,
    )(embedding_padded, w1, b1, w2, b2)


def diffusion_embedding_forward(diffusion_step, projected_table, num_steps):
    """Per-call path after precompute: plain XLA row gather.

    The previous standalone gather kernel was 100% dispatch/pipeline-setup
    bound plus a redundant full-table DMA, so the projected-table lookup is
    left to XLA (it fuses the tiny gather into the downstream consumer).
    """
    steps = jnp.clip(diffusion_step.astype(jnp.int32), 0, num_steps - 1)
    return jnp.take(projected_table, steps, axis=0)


def prepare_fused_params(w1, b1, w2, b2):
    """One-time bf16 cast of the Linear weights for the fused per-call path
    (halves per-call weight DMA); biases and SiLU stay f32."""
    return w1.astype(jnp.bfloat16), b1, w2.astype(jnp.bfloat16), b2


def diffusion_embedding_forward_fused(diffusion_step, embedding_padded,
                                      w1, b1, w2, b2, num_steps):
    """Alternative per-call path: gather + MLP fused in ONE ungridded pallas_call."""
    steps = jnp.clip(diffusion_step.astype(jnp.int32), 0, num_steps - 1).reshape(-1)
    batch = steps.shape[0]
    n_pad, emb_dim = embedding_padded.shape
    proj_dim = w2.shape[1]
    w_bytes = (emb_dim * proj_dim + proj_dim * proj_dim) * jnp.dtype(w1.dtype).itemsize
    cost = pl.CostEstimate(
        flops=2 * batch * emb_dim * proj_dim + 2 * batch * proj_dim * proj_dim,
        transcendentals=2 * batch * proj_dim,
        bytes_accessed=(4 * batch + 4 * n_pad * emb_dim + int(w_bytes)
                        + 4 * 2 * proj_dim + 4 * batch * proj_dim))
    return pl.pallas_call(
        _fused_forward_kernel,
        out_shape=jax.ShapeDtypeStruct((batch, proj_dim), jnp.float32),
        in_specs=[_SMEM, _VMEM, _VMEM, _VMEM, _VMEM, _VMEM],
        out_specs=_VMEM,
        scratch_shapes=[pltpu.VMEM((batch, emb_dim), jnp.float32)],
        cost_estimate=cost,
    )(steps, embedding_padded, w1, b1, w2, b2)


# ---------------------------------------------------------------------------
# Params / reference
# ---------------------------------------------------------------------------

def make_params(num_steps=50, embedding_dim=128, projection_dim=None, seed=0):
    if projection_dim is None:
        projection_dim = embedding_dim
    emb = _build_embedding(num_steps, embedding_dim // 2)   # (num_steps, embedding_dim)
    n_pad = _round_up(num_steps, 16)                        # two sublane-aligned row blocks
    embedding_padded = jnp.pad(emb, ((0, n_pad - num_steps), (0, 0)))

    key = jax.random.PRNGKey(seed)
    k1, k2, k3, k4 = jax.random.split(key, 4)
    # nn.Linear default init: U(-1/sqrt(fan_in), 1/sqrt(fan_in)); weights stored transposed.
    bound1 = 1.0 / math.sqrt(embedding_dim)
    w1 = jax.random.uniform(k1, (embedding_dim, projection_dim), jnp.float32, -bound1, bound1)
    b1 = jax.random.uniform(k2, (1, projection_dim), jnp.float32, -bound1, bound1)
    bound2 = 1.0 / math.sqrt(projection_dim)
    w2 = jax.random.uniform(k3, (projection_dim, projection_dim), jnp.float32, -bound2, bound2)
    b2 = jax.random.uniform(k4, (1, projection_dim), jnp.float32, -bound2, bound2)
    return embedding_padded, w1, b1, w2, b2


def reference_forward(diffusion_step, embedding, w1, b1, w2, b2):
    x = jnp.take(embedding, diffusion_step.astype(jnp.int32), axis=0)
    h = x @ w1 + b1
    h = h * jax.nn.sigmoid(h)
    h = h @ w2 + b2
    h = h * jax.nn.sigmoid(h)
    return h


if __name__ == "__main__":
    num_steps = 50
    embedding_dim = 128
    batch = 8     # >= 8 fills one full f32 (8,128) vreg tile in the output

    embedding_padded, w1, b1, w2, b2 = make_params(num_steps, embedding_dim, seed=0)

    step_key = jax.random.PRNGKey(0)
    diffusion_step = jax.random.randint(step_key, (batch,), 0, num_steps, dtype=jnp.int32)

    ref = reference_forward(diffusion_step, embedding_padded, w1, b1, w2, b2)

    # (1) Recommended path: one-time Pallas precompute of the projected table,
    #     then the per-sampling-step forward is a plain XLA gather.
    table = jax.block_until_ready(
        precompute_projected_table(embedding_padded, w1, b1, w2, b2))
    out = jax.block_until_ready(
        diffusion_embedding_forward(diffusion_step, table, num_steps))
    assert out.shape == (batch, embedding_dim), out.shape
    assert jnp.allclose(out, ref, atol=1e-5, rtol=1e-5), "precompute+take path mismatch"

    # (2) Fully fused per-call path: SMEM-indexed row gather + bf16-weight MLP
    #     in a single ungridded pallas_call.
    w1b, b1f, w2b, b2f = prepare_fused_params(w1, b1, w2, b2)
    out_fused = jax.block_until_ready(
        diffusion_embedding_forward_fused(diffusion_step, embedding_padded,
                                          w1b, b1f, w2b, b2f, num_steps))
    assert out_fused.shape == (batch, embedding_dim), out_fused.shape
    assert jnp.allclose(out_fused, ref, atol=2e-2, rtol=2e-2), "fused path mismatch"

    print("KERNEL_OK")
</pallas_src>

<mosaic_0001>
module attributes {stable_mosaic.version = 11 : i64} {
  func.func @_project_table_kernel(%arg0: i32, %arg1: memref<32x128xf32, #tpu.memory_space<vmem>>, %arg2: memref<128x128xf32, #tpu.memory_space<vmem>>, %arg3: memref<1x128xf32, #tpu.memory_space<vmem>>, %arg4: memref<128x128xf32, #tpu.memory_space<vmem>>, %arg5: memref<1x128xf32, #tpu.memory_space<vmem>>, %arg6: memref<32x128xf32, #tpu.memory_space<vmem>>) attributes {dimension_semantics = [#tpu.dimension_semantics<parallel>], iteration_bounds = array<i64: 2>, scalar_prefetch = 0 : i64, scratch_operands = 0 : i64, tpu.core_type = #tpu.core_type<tc>, window_params = [{transform_indices = @transform_0, window_bounds = array<i64: 32, 128>}, {pipeline_mode = #tpu.pipeline_mode<synchronous>, transform_indices = @transform_1, window_bounds = array<i64: 128, 128>}, {pipeline_mode = #tpu.pipeline_mode<synchronous>, transform_indices = @transform_2, window_bounds = array<i64: 1, 128>}, {pipeline_mode = #tpu.pipeline_mode<synchronous>, transform_indices = @transform_3, window_bounds = array<i64: 128, 128>}, {pipeline_mode = #tpu.pipeline_mode<synchronous>, transform_indices = @transform_4, window_bounds = array<i64: 1, 128>}, {transform_indices = @transform_5, window_bounds = array<i64: 32, 128>}]} {
    %c0 = arith.constant 0 : index
    %c0_0 = arith.constant 0 : index
    %0 = vector.load %arg1[%c0, %c0_0] : memref<32x128xf32, #tpu.memory_space<vmem>>, vector<32x128xf32>
    %c0_1 = arith.constant 0 : index
    %c0_2 = arith.constant 0 : index
    %1 = vector.load %arg2[%c0_1, %c0_2] : memref<128x128xf32, #tpu.memory_space<vmem>>, vector<128x128xf32>
    %cst = arith.constant dense<0.000000e+00> : vector<32x128xf32>
    %2 = tpu.matmul %0, %1, %cst {dimension_numbers = #tpu.dot_dimension_numbers<[1], [0], [0], [1], [0, 0, 1, 1], [], []>} : vector<32x128xf32>, vector<128x128xf32>, vector<32x128xf32> -> vector<32x128xf32>
    %c0_3 = arith.constant 0 : index
    %c0_4 = arith.constant 0 : index
    %3 = vector.load %arg3[%c0_3, %c0_4] : memref<1x128xf32, #tpu.memory_space<vmem>>, vector<1x128xf32>
    %4 = vector.broadcast %3 : vector<1x128xf32> to vector<32x128xf32>
    %5 = arith.addf %2, %4 : vector<32x128xf32>
    %6 = arith.negf %5 : vector<32x128xf32>
    %7 = math.exp %6 : vector<32x128xf32>
    %cst_5 = arith.constant 1.000000e+00 : f32
    %8 = vector.broadcast %cst_5 : f32 to vector<32x128xf32>
    %9 = arith.addf %8, %7 : vector<32x128xf32>
    %10 = arith.divf %8, %9 : vector<32x128xf32>
    %11 = arith.mulf %5, %10 : vector<32x128xf32>
    %c0_6 = arith.constant 0 : index
    %c0_7 = arith.constant 0 : index
    %12 = vector.load %arg4[%c0_6, %c0_7] : memref<128x128xf32, #tpu.memory_space<vmem>>, vector<128x128xf32>
    %cst_8 = arith.constant dense<0.000000e+00> : vector<32x128xf32>
    %13 = tpu.matmul %11, %12, %cst_8 {dimension_numbers = #tpu.dot_dimension_numbers<[1], [0], [0], [1], [0, 0, 1, 1], [], []>} : vector<32x128xf32>, vector<128x128xf32>, vector<32x128xf32> -> vector<32x128xf32>
    %c0_9 = arith.constant 0 : index
    %c0_10 = arith.constant 0 : index
    %14 = vector.load %arg5[%c0_9, %c0_10] : memref<1x128xf32, #tpu.memory_space<vmem>>, vector<1x128xf32>
    %15 = vector.broadcast %14 : vector<1x128xf32> to vector<32x128xf32>
    %16 = arith.addf %13, %15 : vector<32x128xf32>
    %17 = arith.negf %16 : vector<32x128xf32>
    %18 = math.exp %17 : vector<32x128xf32>
    %cst_11 = arith.constant 1.000000e+00 : f32
    %19 = vector.broadcast %cst_11 : f32 to vector<32x128xf32>
    %20 = arith.addf %19, %18 : vector<32x128xf32>
    %21 = arith.divf %19, %20 : vector<32x128xf32>
    %22 = arith.mulf %16, %21 : vector<32x128xf32>
    %c0_12 = arith.constant 0 : index
    %c0_13 = arith.constant 0 : index
    %23 = vector.load %arg6[%c0_12, %c0_13] : memref<32x128xf32, #tpu.memory_space<vmem>>, vector<32x128xf32>
    tpu.vector_store %arg6[%c0_12, %c0_13], %22 {strides = array<i32>} : memref<32x128xf32, #tpu.memory_space<vmem>>, vector<32x128xf32>,
    return
  }
  func.func @transform_0(%arg0: i32) -> (i32, i32) {
    %c0_i32 = arith.constant 0 : i32
    %c0_i32_0 = arith.constant 0 : i32
    return %arg0, %c0_i32 : i32, i32
  }
  func.func @transform_1(%arg0: i32) -> (i32, i32) {
    %c0_i32 = arith.constant 0 : i32
    %c0_i32_0 = arith.constant 0 : i32
    %c0_i32_1 = arith.constant 0 : i32
    return %c0_i32, %c0_i32_0 : i32, i32
  }
  func.func @transform_2(%arg0: i32) -> (i32, i32) {
    %c0_i32 = arith.constant 0 : i32
    %c0_i32_0 = arith.constant 0 : i32
    %c0_i32_1 = arith.constant 0 : i32
    return %c0_i32, %c0_i32_0 : i32, i32
  }
  func.func @transform_3(%arg0: i32) -> (i32, i32) {
    %c0_i32 = arith.constant 0 : i32
    %c0_i32_0 = arith.constant 0 : i32
    %c0_i32_1 = arith.constant 0 : i32
    return %c0_i32, %c0_i32_0 : i32, i32
  }
  func.func @transform_4(%arg0: i32) -> (i32, i32) {
    %c0_i32 = arith.constant 0 : i32
    %c0_i32_0 = arith.constant 0 : i32
    %c0_i32_1 = arith.constant 0 : i32
    return %c0_i32, %c0_i32_0 : i32, i32
  }
  func.func @transform_5(%arg0: i32) -> (i32, i32) {
    %c0_i32 = arith.constant 0 : i32
    %c0_i32_0 = arith.constant 0 : i32
    return %arg0, %c0_i32 : i32, i32
  }
}

</mosaic_0001>

<llo_original>
// kernel: tpu_custom_call.1
$region0: #{tpu_custom_call.1}
  #allocation0 [shape = 'u32[]', space=smem, size = 0x4, offset = 0x4, fixed_abs, tag = 'smem constant byte address 0x4 - core index']
  #allocation1 [shape = 'u32[144,128]{1,0:T(1,128)}', space=vmem, size = 0x12000, scoped, tag = 'internal scratch']
  %s0 = inlined_call_operand.hbm [shape: f32[64,128], index: 0, kind: input, shape index: {}]
  %s1 = inlined_call_operand.hbm [shape: f32[128,128], index: 1, kind: input, shape index: {}]
  %s2 = inlined_call_operand.vmem [shape: f32[1,128], index: 2, kind: input, shape index: {}]
  %s3 = inlined_call_operand.hbm [shape: f32[128,128], index: 3, kind: input, shape index: {}]
  %s4 = inlined_call_operand.vmem [shape: f32[1,128], index: 4, kind: input, shape index: {}]
  %s5 = inlined_call_operand.hbm [shape: f32[64,128], index: 5, kind: output, shape index: {}]
  %s6 = sld [smem:[#allocation0]]
  $region65: #{tpu_custom_call.1} parent=0
    _
  %s8 = ssub.s32 1, %s6
  %s9 = scalar_select 0, %s8, %s6
  $region1: #{tpu_custom_call.1} parent=0
    #allocation2 [shape = 'u8[32768]{0}', space=vmem, size = 0x8000, scoped, tag = 'input window, operand 0']
    #allocation3 [shape = 's32[2]{0}', space=sflag, size = 0x8, scoped, tag = 'scoped memory for tpu_custom_call.1']
    #allocation4 [shape = 's32[2]{0}', space=sflag, size = 0x8, scoped, tag = 'scoped memory for tpu_custom_call.1']
    #allocation5 [shape = 'u8[65536]{0}', space=vmem, size = 0x10000, scoped, tag = 'input window, operand 1, single buffered']
    #allocation6 [shape = 's32[1]{0}', space=sflag, size = 0x4, scoped, tag = 'scoped memory for tpu_custom_call.1']
    #allocation7 [shape = 'u8[65536]{0}', space=vmem, size = 0x10000, scoped, tag = 'input window, operand 3, single buffered']
    #allocation8 [shape = 'u8[32768]{0}', space=vmem, size = 0x8000, scoped, tag = 'output window, operand 0']
    %10 = vsyncpa [#allocation3], 0
    %s11 = scalar_lea.sflag [#allocation3], 1
    %12 = vsyncpa %s11, 0
    %13 = vsyncpa [#allocation6], 0
    %14 = vsyncpa [#allocation4], 0
    %s15 = scalar_lea.sflag [#allocation4], 1
    %16 = vsyncpa %s15, 0
    loop: start=0, step=1, limit=4
    $region2: #{tpu_custom_call.1} parent=1 // loop_pre_header
      _
    $region3: #{tpu_custom_call.1} parent=1 // loop_header
      %s18 = sphi 0, %s22
      %p19 = scmp.ge.s32.totalorder %s18, 4
      %s28 = sphi 0, %s30
      %s31 = sphi 0, %s28
      %s32 = sphi 0, %s31
      %s48 = sphi 0, %s32
      %s52 = sphi 0, %s52
      %s54 = sphi 0, %s52
      %s55 = sphi 0, %s54
      %s69 = sphi 0, %s55
      %s73 = sphi 0, %s73
      %s75 = sphi 0, %s73
      %s76 = sphi 0, %s75
      %s90 = sphi 0, %s76
      %s94 = sphi 0, %s94
      %s96 = sphi 0, %s94
      %s97 = sphi 0, %s96
      %s111 = sphi 0, %s97
      %s115 = sphi 0, %s115
      %s117 = sphi 0, %s115
      %s118 = sphi 0, %s117
      %s132 = sphi 0, %s118
      %s138 = sphi 0, %s140
      %s141 = sphi 0, %s138
      %s142 = sphi 0, %s141
      %s158 = sphi 0, %s142
    $region4: #{tpu_custom_call.1} parent=1 // loop_header_branch
      %21 = sbr.rel (%p19) target = $region8
    $region5: #{tpu_custom_call.1} parent=1 // loop_body
      %s23 = ssub.s32 %s18, 1
      %s24 = ssub.s32 %s18, 2
      %s25 = sadd.s32 %s18, 1
      %s26 = ssub.s32 %s18, %s25
      %p27 = scmp.eq.s32.totalorder %s26, 0
      %s29 = sadd.s32 %s28, 1
      %s30 = scalar_select %p27, %s28, %s29
      %p33 = pneg %p27
      %p34 = scmp.eq.s32.totalorder %s18, 1
      %p35 = por %p33, %p34
      %p36 = scmp.ne.s32.totalorder %s28, %s31
      %p37 = scmp.eq.s32.totalorder %s18, 0
      %p38 = por %p36, %p37
      %p39 = scmp.ne.s32.totalorder %s28, %s31
      %p40 = scmp.eq.s32.totalorder %s23, 1
      %p41 = por %p39, %p40
      %p42 = scmp.ne.s32.totalorder %s31, %s32
      %p43 = scmp.eq.s32.totalorder %s23, 0
      %p44 = por %p42, %p43
      %p45 = scmp.ne.s32.totalorder %s31, %s32
      %p46 = scmp.eq.s32.totalorder %s24, 1
      %p47 = por %p45, %p46
      %p49 = scmp.ne.s32.totalorder %s32, %s48
      %p50 = scmp.eq.s32.totalorder %s24, 0
      %p51 = por %p49, %p50
      %s53 = sadd.s32 %s52, 1
      %p56 = scmp.eq.s32.totalorder %s18, 1
      %p57 = scmp.ne.s32.totalorder %s52, %s54
      %p58 = scmp.eq.s32.totalorder %s18, 0
      %p59 = por %p57, %p58
      %p60 = scmp.ne.s32.totalorder %s52, %s54
      %p61 = scmp.eq.s32.totalorder %s23, 1
      %p62 = por %p60, %p61
      %p63 = scmp.ne.s32.totalorder %s54, %s55
      %p64 = scmp.eq.s32.totalorder %s23, 0
      %p65 = por %p63, %p64
      %p66 = scmp.ne.s32.totalorder %s54, %s55
      %p67 = scmp.eq.s32.totalorder %s24, 1
      %p68 = por %p66, %p67
      %p70 = scmp.ne.s32.totalorder %s55, %s69
      %p71 = scmp.eq.s32.totalorder %s24, 0
      %p72 = por %p70, %p71
      %s74 = sadd.s32 %s73, 1
      %p77 = scmp.eq.s32.totalorder %s18, 1
      %p78 = scmp.ne.s32.totalorder %s73, %s75
      %p79 = scmp.eq.s32.totalorder %s18, 0
      %p80 = por %p78, %p79
      %p81 = scmp.ne.s32.totalorder %s73, %s75
      %p82 = scmp.eq.s32.totalorder %s23, 1
      %p83 = por %p81, %p82
      %p84 = scmp.ne.s32.totalorder %s75, %s76
      %p85 = scmp.eq.s32.totalorder %s23, 0
      %p86 = por %p84, %p85
      %p87 = scmp.ne.s32.totalorder %s75, %s76
      %p88 = scmp.eq.s32.totalorder %s24, 1
      %p89 = por %p87, %p88
      %p91 = scmp.ne.s32.totalorder %s76, %s90
      %p92 = scmp.eq.s32.totalorder %s24, 0
      %p93 = por %p91, %p92
      %s95 = sadd.s32 %s94, 1
      %p98 = scmp.eq.s32.totalorder %s18, 1
      %p99 = scmp.ne.s32.totalorder %s94, %s96
      %p100 = scmp.eq.s32.totalorder %s18, 0
      %p101 = por %p99, %p100
      %p102 = scmp.ne.s32.totalorder %s94, %s96
      %p103 = scmp.eq.s32.totalorder %s23, 1
      %p104 = por %p102, %p103
      %p105 = scmp.ne.s32.totalorder %s96, %s97
      %p106 = scmp.eq.s32.totalorder %s23, 0
      %p107 = por %p105, %p106
      %p108 = scmp.ne.s32.totalorder %s96, %s97
      %p109 = scmp.eq.s32.totalorder %s24, 1
      %p110 = por %p108, %p109
      %p112 = scmp.ne.s32.totalorder %s97, %s111
      %p113 = scmp.eq.s32.totalorder %s24, 0
      %p114 = por %p112, %p113
      %s116 = sadd.s32 %s115, 1
      %p119 = scmp.eq.s32.totalorder %s18, 1
      %p120 = scmp.ne.s32.totalorder %s115, %s117
      %p121 = scmp.eq.s32.totalorder %s18, 0
      %p122 = por %p120, %p121
      %p123 = scmp.ne.s32.totalorder %s115, %s117
      %p124 = scmp.eq.s32.totalorder %s23, 1
      %p125 = por %p123, %p124
      %p126 = scmp.ne.s32.totalorder %s117, %s118
      %p127 = scmp.eq.s32.totalorder %s23, 0
      %p128 = por %p126, %p127
      %p129 = scmp.ne.s32.totalorder %s117, %s118
      %p130 = scmp.eq.s32.totalorder %s24, 1
      %p131 = por %p129, %p130
      %p133 = scmp.ne.s32.totalorder %s118, %s132
      %p134 = scmp.eq.s32.totalorder %s24, 0
      %p135 = por %p133, %p134
      %s136 = ssub.s32 %s18, %s25
      %p137 = scmp.eq.s32.totalorder %s136, 0
      %s139 = sadd.s32 %s138, 1
      %s140 = scalar_select %p137, %s138, %s139
      %p143 = pneg %p137
      %p144 = scmp.eq.s32.totalorder %s18, 1
      %p145 = por %p143, %p144
      %p146 = scmp.ne.s32.totalorder %s138, %s141
      %p147 = scmp.eq.s32.totalorder %s18, 0
      %p148 = por %p146, %p147
      %p149 = scmp.ne.s32.totalorder %s138, %s141
      %p150 = scmp.eq.s32.totalorder %s23, 1
      %p151 = por %p149, %p150
      %p152 = scmp.ne.s32.totalorder %s141, %s142
      %p153 = scmp.eq.s32.totalorder %s23, 0
      %p154 = por %p152, %p153
      %p155 = scmp.ne.s32.totalorder %s141, %s142
      %p156 = scmp.eq.s32.totalorder %s24, 1
      %p157 = por %p155, %p156
      %p159 = scmp.ne.s32.totalorder %s142, %s158
      %p160 = scmp.eq.s32.totalorder %s24, 0
      %p161 = por %p159, %p160
      %p162 = scmp.le.s32.totalorder 1, %s18
      %p163 = scmp.lt.s32.totalorder %s18, 3
      %p164 = pnand %p162, %p163
      %p165 = pneg %p164
      // Predicated region
      $region9: #{tpu_custom_call.1} parent=5 // pred_check
        _
      $region10: #{tpu_custom_call.1} parent=5 // pred_check_branch
        %167 = sbr.rel (%p164) target = $region12
      $region11: #{tpu_custom_call.1} parent=5 // pred_region
        %s168 = ssub.s32 %s18, 1
        // Predicated region
        $region13: #{tpu_custom_call.1} parent=11 // pred_check
          %p169 = pneg %p65
        $region14: #{tpu_custom_call.1} parent=11 // pred_check_branch
          %171 = sbr.rel (%p169) target = $region16
        $region15: #{tpu_custom_call.1} parent=11 // pred_region
          %s173 = ssub.s32 2048, 2048
          %174 = vsyncadd [#allocation6], %s173
          %s175 = sshll.u32 [#allocation5], 4
          %s176 = int_to_ptr.vmem [resolvable:$true] %s175
          %181 = dma.hbm_to_vmem [thread:$0]  %s1, 2048, %s176, [#allocation6], 128, 128, 8
        $region16: #{tpu_custom_call.1} parent=11 // pred_fallthru
          _
        // Predicated region
        $region17: #{tpu_custom_call.1} parent=11 // pred_check
          %p182 = pneg %p86
        $region18: #{tpu_custom_call.1} parent=11 // pred_check_branch
          %184 = sbr.rel (%p182) target = $region20
        $region19: #{tpu_custom_call.1} parent=11 // pred_region
          _
        $region20: #{tpu_custom_call.1} parent=11 // pred_fallthru
          _
        // Predicated region
        $region21: #{tpu_custom_call.1} parent=11 // pred_check
          %p185 = pneg %p107
        $region22: #{tpu_custom_call.1} parent=11 // pred_check_branch
          %187 = sbr.rel (%p185) target = $region24
        $region23: #{tpu_custom_call.1} parent=11 // pred_region
          %s189 = ssub.s32 2048, 2048
          %190 = vsyncadd [#allocation6], %s189
          %s191 = sshll.u32 [#allocation7], 4
          %s192 = int_to_ptr.vmem [resolvable:$true] %s191
          %197 = dma.hbm_to_vmem [thread:$0]  %s3, 2048, %s192, [#allocation6], 128, 128, 8
        $region24: #{tpu_custom_call.1} parent=11 // pred_fallthru
          _
        // Predicated region
        $region25: #{tpu_custom_call.1} parent=11 // pred_check
          %p198 = pneg %p128
        $region26: #{tpu_custom_call.1} parent=11 // pred_check_branch
          %200 = sbr.rel (%p198) target = $region28
        $region27: #{tpu_custom_call.1} parent=11 // pred_region
          _
        $region28: #{tpu_custom_call.1} parent=11 // pred_fallthru
          _
      $region12: #{tpu_custom_call.1} parent=5 // pred_fallthru
        _
      %p201 = scmp.lt.s32.totalorder %s18, 2
      // Predicated region
      $region29: #{tpu_custom_call.1} parent=5 // pred_check
        %p202 = pneg %p201
      $region30: #{tpu_custom_call.1} parent=5 // pred_check_branch
        %204 = sbr.rel (%p202) target = $region32
      $region31: #{tpu_custom_call.1} parent=5 // pred_region
        // Predicated region
        $region33: #{tpu_custom_call.1} parent=31 // pred_check
          %p205 = pneg %p38
        $region34: #{tpu_custom_call.1} parent=31 // pred_check_branch
          %207 = sbr.rel (%p205) target = $region36
        $region35: #{tpu_custom_call.1} parent=31 // pred_region
          %s208 = sand.u32 %s28, 1
          %s209 = scalar_lea.sflag [#allocation3], %s208
          %s210 = sand.u32 %s28, 1
          %s211 = smul.addr %s210, 32
          %s212 = scalar_lea.vmem [#allocation2], %s211
          %s213 = smul.u32 4, %s18
          %s215 = ssub.s32 512, 512
          %216 = vsyncadd %s209, %s215
          %s217 = smul.addr %s213, 128
          %s218 = scalar_lea.hbm %s0, %s217
          %s219 = sshll.u32 %s212, 4
          %s220 = int_to_ptr.vmem [resolvable:$true] %s219
          %225 = dma.hbm_to_vmem [thread:$0]  %s218, 512, %s220, %s209, 128, 128, 8
        $region36: #{tpu_custom_call.1} parent=31 // pred_fallthru
          _
      $region32: #{tpu_custom_call.1} parent=5 // pred_fallthru
        _
      %p226 = scmp.le.s32.totalorder 1, %s18
      %p227 = scmp.lt.s32.totalorder %s18, 3
      %p228 = pnand %p226, %p227
      %p229 = pneg %p228
      // Predicated region
      $region37: #{tpu_custom_call.1} parent=5 // pred_check
        _
      $region38: #{tpu_custom_call.1} parent=5 // pred_check_branch
        %231 = sbr.rel (%p228) target = $region40
      $region39: #{tpu_custom_call.1} parent=5 // pred_region
        %s232 = ssub.s32 %s18, 1
        %s233 = sand.u32 %s31, 1
        %s234 = scalar_lea.sflag [#allocation3], %s233
        %s235 = sand.u32 %s31, 1
        %s236 = smul.addr %s235, 32
        %s237 = scalar_lea.vmem [#allocation2], %s236
        // Predicated region
        $region41: #{tpu_custom_call.1} parent=39 // pred_check
          %p238 = pneg %p44
        $region42: #{tpu_custom_call.1} parent=39 // pred_check_branch
          %240 = sbr.rel (%p238) target = $region44
        $region43: #{tpu_custom_call.1} parent=39 // pred_region
          %241 = dma.done %s234, 512
        $region44: #{tpu_custom_call.1} parent=39 // pred_fallthru
          _
        // Predicated region
        $region45: #{tpu_custom_call.1} parent=39 // pred_check
          %p242 = pneg %p65
        $region46: #{tpu_custom_call.1} parent=39 // pred_check_branch
          %244 = sbr.rel (%p242) target = $region48
        $region47: #{tpu_custom_call.1} parent=39 // pred_region
          %245 = dma.done [#allocation6], 2048
        $region48: #{tpu_custom_call.1} parent=39 // pred_fallthru
          _
        // Predicated region
        $region49: #{tpu_custom_call.1} parent=39 // pred_check
          %p246 = pneg %p107
        $region50: #{tpu_custom_call.1} parent=39 // pred_check_branch
          %248 = sbr.rel (%p246) target = $region52
        $region51: #{tpu_custom_call.1} parent=39 // pred_region
          %249 = dma.done [#allocation6], 2048
        $region52: #{tpu_custom_call.1} parent=39 // pred_fallthru
          _
        %s250 = sand.u32 %s31, 1
        %s251 = scalar_lea.sflag [#allocation3], %s250
        %s252 = sand.u32 %s31, 1
        %s253 = smul.addr %s252, 32
        %s254 = scalar_lea.vmem [#allocation2], %s253
        %p255 = pneg %p44
        %p256 = pneg %p41
        %p257 = pneg %p65
        %p258 = pneg %p62
        %p259 = pneg %p86
        %p260 = pneg %p83
        %p261 = pneg %p107
        %p262 = pneg %p104
        %p263 = pneg %p128
        %p264 = pneg %p125
        %p265 = pneg %p154
        %p266 = pneg %p151
        %s267 = sand.u32 %s141, 1
        %s268 = scalar_lea.sflag [#allocation4], %s267
        %s269 = sand.u32 %s141, 1
        %s270 = smul.addr %s269, 32
        %s271 = scalar_lea.vmem [#allocation8], %s270
        %s272 = smul.u32 4, %s23
        %s273 = smul.u32 4, %s23
        %v274 = vld [vmem:[%s237] sm:$0xff]
        %v275 = vld [vmem:[%s237 + $0x8] sm:$0xff]
        %v276 = vld [vmem:[%s237 + $0x10] sm:$0xff]
        %v277 = vld [vmem:[%s237 + $0x18] sm:$0xff]
        %v278 = vld [vmem:[#allocation5] sm:$0xff]
        %v279 = vld [vmem:[#allocation5 + $0x8] sm:$0xff]
        %v280 = vld [vmem:[#allocation5 + $0x10] sm:$0xff]
        %v281 = vld [vmem:[#allocation5 + $0x18] sm:$0xff]
        %v282 = vld [vmem:[#allocation5 + $0x20] sm:$0xff]
        %v283 = vld [vmem:[#allocation5 + $0x28] sm:$0xff]
        %v284 = vld [vmem:[#allocation5 + $0x30] sm:$0xff]
        %v285 = vld [vmem:[#allocation5 + $0x38] sm:$0xff]
        %v286 = vld [vmem:[#allocation5 + $0x40] sm:$0xff]
        %v287 = vld [vmem:[#allocation5 + $0x48] sm:$0xff]
        %v288 = vld [vmem:[#allocation5 + $0x50] sm:$0xff]
        %v289 = vld [vmem:[#allocation5 + $0x58] sm:$0xff]
        %v290 = vld [vmem:[#allocation5 + $0x60] sm:$0xff]
        %v291 = vld [vmem:[#allocation5 + $0x68] sm:$0xff]
        %v292 = vld [vmem:[#allocation5 + $0x70] sm:$0xff]
        %v293 = vld [vmem:[#allocation5 + $0x78] sm:$0xff]
        %v294 = vld [vmem:[%s2] sm:$0x1]
        %v296 = vlaneseq
        %v297 = vshrl.u32 %v296, 7
        %v298 = vsub.s32 0, %v297
        %v299 = vrot.slane %v294, %v298
        %301 = vmatprep.subr.mxu0 0.0
        %302 = vmatpush1.msra.mxu0 %v293
        %303 = vmatprep.subr.mxu0 0.0
        %304 = vmatpush1.msra.mxu0 %v292
        %305 = vmatprep.subr.mxu0 0.0
        %306 = vmatpush1.msra.mxu0 %v291
        %307 = vmatprep.subr.mxu0 0.0
        %308 = vmatpush1.msra.mxu0 %v290
        %309 = vmatprep.subr.mxu0 0.0
        %310 = vmatpush1.msra.mxu0 %v289
        %311 = vmatprep.subr.mxu0 0.0
        %312 = vmatpush1.msra.mxu0 %v288
        %313 = vmatprep.subr.mxu0 0.0
        %314 = vmatpush1.msra.mxu0 %v287
        %315 = vmatprep.subr.mxu0 0.0
        %316 = vmatpush1.msra.mxu0 %v286
        %317 = vmatprep.subr.mxu0 0.0
        %318 = vmatpush1.msra.mxu0 %v285
        %319 = vmatprep.subr.mxu0 0.0
        %320 = vmatpush1.msra.mxu0 %v284
        %321 = vmatprep.subr.mxu0 0.0
        %322 = vmatpush1.msra.mxu0 %v283
        %323 = vmatprep.subr.mxu0 0.0
        %324 = vmatpush1.msra.mxu0 %v282
        %325 = vmatprep.subr.mxu0 0.0
        %326 = vmatpush1.msra.mxu0 %v281
        %327 = vmatprep.subr.mxu0 0.0
        %328 = vmatpush1.msra.mxu0 %v280
        %329 = vmatprep.subr.mxu0 0.0
        %330 = vmatpush1.msra.mxu0 %v279
        %331 = vmatprep.subr.mxu0 0.0
        %332 = vmatpush1.msra.mxu0 %v278
        %333 = vmatprep.subr.mxu0 0.0
        %334 = vmatpush2.msra.mxu0 0.0
        %335 = vmatprep.subr.mxu0 0.0
        %336 = vmatpush2.msra.mxu0 0.0
        %337 = vmatprep.subr.mxu0 0.0
        %338 = vmatpush2.msra.mxu0 0.0
        %339 = vmatprep.subr.mxu0 0.0
        %340 = vmatpush2.msra.mxu0 0.0
        %341 = vmatprep.subr.mxu0 0.0
        %342 = vmatpush2.msra.mxu0 0.0
        %343 = vmatprep.subr.mxu0 0.0
        %344 = vmatpush2.msra.mxu0 0.0
        %345 = vmatprep.subr.mxu0 0.0
        %346 = vmatpush2.msra.mxu0 0.0
        %347 = vmatprep.subr.mxu0 0.0
        %348 = vmatpush2.msra.mxu0 0.0
        %349 = vmatprep.subr.mxu0 0.0
        %350 = vmatpush2.msra.mxu0 0.0
        %351 = vmatprep.subr.mxu0 0.0
        %352 = vmatpush2.msra.mxu0 0.0
        %353 = vmatprep.subr.mxu0 0.0
        %354 = vmatpush2.msra.mxu0 0.0
        %355 = vmatprep.subr.mxu0 0.0
        %356 = vmatpush2.msra.mxu0 0.0
        %357 = vmatprep.subr.mxu0 0.0
        %358 = vmatpush2.msra.mxu0 0.0
        %359 = vmatprep.subr.mxu0 0.0
        %360 = vmatpush2.msra.mxu0 0.0
        %361 = vmatprep.subr.mxu0 0.0
        %362 = vmatpush2.msra.mxu0 0.0
        %363 = vmatprep.subr.mxu0 0.0
        %364 = vmatpush2.msra.mxu0 0.0
        %365 = vmatprep.mubr.f32.mxu0 0.0
        %366 = vmatmul.mubr.f32.gmra.mxu0 %v274
        %v367 = vpop.f32.mrf.mxu0
        %v368 = vadd.f32 %v299, %v367
        %v369 = vpop.f32.mrf.mxu0
        %370 = vmatprep.mubr.f32.mxu0 0.0
        %371 = vmatmul.mubr.f32.gmra.mxu0 %v275
        %v372 = vpop.f32.mrf.mxu0
        %v373 = vadd.f32 %v299, %v372
        %v374 = vpop.f32.mrf.mxu0
        %375 = vmatprep.mubr.f32.mxu0 0.0
        %376 = vmatmul.mubr.f32.gmra.mxu0 %v276
        %v377 = vpop.f32.mrf.mxu0
        %v378 = vadd.f32 %v299, %v377
        %v379 = vpop.f32.mrf.mxu0
        %380 = vmatprep.mubr.f32.mxu0 0.0
        %381 = vmatmul.mubr.f32.gmra.mxu0 %v277
        %v382 = vpop.f32.mrf.mxu0
        %v383 = vadd.f32 %v299, %v382
        %v384 = vpop.f32.mrf.mxu0
        %385 = vdwg.mxu0
        %v386 = vxor.u32 %v368, 2147483648
        %v387 = vxor.u32 %v373, 2147483648
        %v388 = vxor.u32 %v378, 2147483648
        %v389 = vxor.u32 %v383, 2147483648
        %v390 = vmul.f32 %v386, 1.442695
        %v391 = vpow.pop %v390
        %v392 = vmul.f32 %v387, 1.442695
        %v393 = vpow.pop %v392
        %v394 = vmul.f32 %v388, 1.442695
        %v395 = vpow.pop %v394
        %v396 = vmul.f32 %v389, 1.442695
        %v397 = vpow.pop %v396
        %v398 = vadd.f32 %v391, 1.0
        %v399 = vadd.f32 %v393, 1.0
        %v400 = vadd.f32 %v395, 1.0
        %v401 = vadd.f32 %v397, 1.0
        %v402 = vrcp.pop %v398
        %v403 = vmul.f32 1.0, %v402
        %v404 = vrcp.pop %v399
        %v405 = vmul.f32 1.0, %v404
        %v406 = vrcp.pop %v400
        %v407 = vmul.f32 1.0, %v406
        %v408 = vrcp.pop %v401
        %v409 = vmul.f32 1.0, %v408
        %v410 = vmul.f32 %v368, %v403
        %v411 = vmul.f32 %v373, %v405
        %v412 = vmul.f32 %v378, %v407
        %v413 = vmul.f32 %v383, %v409
        %v414 = vld [vmem:[#allocation7] sm:$0xff]
        %v415 = vld [vmem:[#allocation7 + $0x8] sm:$0xff]
        %v416 = vld [vmem:[#allocation7 + $0x10] sm:$0xff]
        %v417 = vld [vmem:[#allocation7 + $0x18] sm:$0xff]
        %v418 = vld [vmem:[#allocation7 + $0x20] sm:$0xff]
        %v419 = vld [vmem:[#allocation7 + $0x28] sm:$0xff]
        %v420 = vld [vmem:[#allocation7 + $0x30] sm:$0xff]
        %v421 = vld [vmem:[#allocation7 + $0x38] sm:$0xff]
        %v422 = vld [vmem:[#allocation7 + $0x40] sm:$0xff]
        %v423 = vld [vmem:[#allocation7 + $0x48] sm:$0xff]
        %v424 = vld [vmem:[#allocation7 + $0x50] sm:$0xff]
        %v425 = vld [vmem:[#allocation7 + $0x58] sm:$0xff]
        %v426 = vld [vmem:[#allocation7 + $0x60] sm:$0xff]
        %v427 = vld [vmem:[#allocation7 + $0x68] sm:$0xff]
        %v428 = vld [vmem:[#allocation7 + $0x70] sm:$0xff]
        %v429 = vld [vmem:[#allocation7 + $0x78] sm:$0xff]
        %v430 = vld [vmem:[%s4] sm:$0x1]
        %v432 = vlaneseq
        %v433 = vshrl.u32 %v432, 7
        %v434 = vsub.s32 0, %v433
        %v435 = vrot.slane %v430, %v434
        %437 = vmatprep.subr.mxu0 0.0
        %438 = vmatpush1.msra.mxu0 %v429
        %439 = vmatprep.subr.mxu0 0.0
        %440 = vmatpush1.msra.mxu0 %v428
        %441 = vmatprep.subr.mxu0 0.0
        %442 = vmatpush1.msra.mxu0 %v427
        %443 = vmatprep.subr.mxu0 0.0
        %444 = vmatpush1.msra.mxu0 %v426
        %445 = vmatprep.subr.mxu0 0.0
        %446 = vmatpush1.msra.mxu0 %v425
        %447 = vmatprep.subr.mxu0 0.0
        %448 = vmatpush1.msra.mxu0 %v424
        %449 = vmatprep.subr.mxu0 0.0
        %450 = vmatpush1.msra.mxu0 %v423
        %451 = vmatprep.subr.mxu0 0.0
        %452 = vmatpush1.msra.mxu0 %v422
        %453 = vmatprep.subr.mxu0 0.0
        %454 = vmatpush1.msra.mxu0 %v421
        %455 = vmatprep.subr.mxu0 0.0
        %456 = vmatpush1.msra.mxu0 %v420
        %457 = vmatprep.subr.mxu0 0.0
        %458 = vmatpush1.msra.mxu0 %v419
        %459 = vmatprep.subr.mxu0 0.0
        %460 = vmatpush1.msra.mxu0 %v418
        %461 = vmatprep.subr.mxu0 0.0
        %462 = vmatpush1.msra.mxu0 %v417
        %463 = vmatprep.subr.mxu0 0.0
        %464 = vmatpush1.msra.mxu0 %v416
        %465 = vmatprep.subr.mxu0 0.0
        %466 = vmatpush1.msra.mxu0 %v415
        %467 = vmatprep.subr.mxu0 0.0
        %468 = vmatpush1.msra.mxu0 %v414
        %469 = vmatprep.subr.mxu0 0.0
        %470 = vmatpush2.msra.mxu0 0.0
        %471 = vmatprep.subr.mxu0 0.0
        %472 = vmatpush2.msra.mxu0 0.0
        %473 = vmatprep.subr.mxu0 0.0
        %474 = vmatpush2.msra.mxu0 0.0
        %475 = vmatprep.subr.mxu0 0.0
        %476 = vmatpush2.msra.mxu0 0.0
        %477 = vmatprep.subr.mxu0 0.0
        %478 = vmatpush2.msra.mxu0 0.0
        %479 = vmatprep.subr.mxu0 0.0
        %480 = vmatpush2.msra.mxu0 0.0
        %481 = vmatprep.subr.mxu0 0.0
        %482 = vmatpush2.msra.mxu0 0.0
        %483 = vmatprep.subr.mxu0 0.0
        %484 = vmatpush2.msra.mxu0 0.0
        %485 = vmatprep.subr.mxu0 0.0
        %486 = vmatpush2.msra.mxu0 0.0
        %487 = vmatprep.subr.mxu0 0.0
        %488 = vmatpush2.msra.mxu0 0.0
        %489 = vmatprep.subr.mxu0 0.0
        %490 = vmatpush2.msra.mxu0 0.0
        %491 = vmatprep.subr.mxu0 0.0
        %492 = vmatpush2.msra.mxu0 0.0
        %493 = vmatprep.subr.mxu0 0.0
        %494 = vmatpush2.msra.mxu0 0.0
        %495 = vmatprep.subr.mxu0 0.0
        %496 = vmatpush2.msra.mxu0 0.0
        %497 = vmatprep.subr.mxu0 0.0
        %498 = vmatpush2.msra.mxu0 0.0
        %499 = vmatprep.subr.mxu0 0.0
        %500 = vmatpush2.msra.mxu0 0.0
        %501 = vmatprep.mubr.f32.mxu0 0.0
        %502 = vmatmul.mubr.f32.gmra.mxu0 %v410
        %v503 = vpop.f32.mrf.mxu0
        %v504 = vadd.f32 %v435, %v503
        %v505 = vpop.f32.mrf.mxu0
        %506 = vmatprep.mubr.f32.mxu0 0.0
        %507 = vmatmul.mubr.f32.gmra.mxu0 %v411
        %v508 = vpop.f32.mrf.mxu0
        %v509 = vadd.f32 %v435, %v508
        %v510 = vpop.f32.mrf.mxu0
        %511 = vmatprep.mubr.f32.mxu0 0.0
        %512 = vmatmul.mubr.f32.gmra.mxu0 %v412
        %v513 = vpop.f32.mrf.mxu0
        %v514 = vadd.f32 %v435, %v513
        %v515 = vpop.f32.mrf.mxu0
        %516 = vmatprep.mubr.f32.mxu0 0.0
        %517 = vmatmul.mubr.f32.gmra.mxu0 %v413
        %v518 = vpop.f32.mrf.mxu0
        %v519 = vadd.f32 %v435, %v518
        %v520 = vpop.f32.mrf.mxu0
        %521 = vdwg.mxu0
        %v522 = vxor.u32 %v504, 2147483648
        %v523 = vxor.u32 %v509, 2147483648
        %v524 = vxor.u32 %v514, 2147483648
        %v525 = vxor.u32 %v519, 2147483648
        %v526 = vmul.f32 %v522, 1.442695
        %v527 = vpow.pop %v526
        %v528 = vmul.f32 %v523, 1.442695
        %v529 = vpow.pop %v528
        %v530 = vmul.f32 %v524, 1.442695
        %v531 = vpow.pop %v530
        %v532 = vmul.f32 %v525, 1.442695
        %v533 = vpow.pop %v532
        %v534 = vadd.f32 %v527, 1.0
        %v535 = vadd.f32 %v529, 1.0
        %v536 = vadd.f32 %v531, 1.0
        %v537 = vadd.f32 %v533, 1.0
        %v538 = vrcp.pop %v534
        %v539 = vmul.f32 1.0, %v538
        %v540 = vrcp.pop %v535
        %v541 = vmul.f32 1.0, %v540
        %v542 = vrcp.pop %v536
        %v543 = vmul.f32 1.0, %v542
        %v544 = vrcp.pop %v537
        %v545 = vmul.f32 1.0, %v544
        %v546 = vmul.f32 %v504, %v539
        %v547 = vmul.f32 %v509, %v541
        %v548 = vmul.f32 %v514, %v543
        %v549 = vmul.f32 %v519, %v545
        %550 = vst [vmem:[%s271] sm:$0xff] %v546
        %551 = vst [vmem:[%s271 + $0x8] sm:$0xff] %v547
        %552 = vst [vmem:[%s271 + $0x10] sm:$0xff] %v548
        %553 = vst [vmem:[%s271 + $0x18] sm:$0xff] %v549
        %s554 = sand.u32 %s141, 1
        %s555 = scalar_lea.sflag [#allocation4], %s554
        %s556 = sand.u32 %s141, 1
        %s557 = smul.addr %s556, 32
        %s558 = scalar_lea.vmem [#allocation8], %s557
        // Predicated region
        $region53: #{tpu_custom_call.1} parent=39 // pred_check
          %p559 = pneg %p151
        $region54: #{tpu_custom_call.1} parent=39 // pred_check_branch
          %561 = sbr.rel (%p559) target = $region56
        $region55: #{tpu_custom_call.1} parent=39 // pred_region
          %s562 = smul.u32 4, %s23
          %s564 = ssub.s32 512, 512
          %565 = vsyncadd %s555, %s564
          %s566 = smul.addr %s562, 128
          %s567 = scalar_lea.hbm %s5, %s566
          %s568 = sshll.u32 %s558, 4
          %s569 = int_to_ptr.vmem [resolvable:$true] %s568
          %574 = dma.vmem_to_hbm [thread:$0]  %s569, 512, %s567, %s555, 128, 128, 8
        $region56: #{tpu_custom_call.1} parent=39 // pred_fallthru
          _
      $region40: #{tpu_custom_call.1} parent=5 // pred_fallthru
        _
      %p575 = scmp.le.s32.totalorder 2, %s18
      // Predicated region
      $region57: #{tpu_custom_call.1} parent=5 // pred_check
        %p576 = pneg %p575
      $region58: #{tpu_custom_call.1} parent=5 // pred_check_branch
        %578 = sbr.rel (%p576) target = $region60
      $region59: #{tpu_custom_call.1} parent=5 // pred_region
        %s579 = ssub.s32 %s18, 2
        // Predicated region
        $region61: #{tpu_custom_call.1} parent=59 // pred_check
          %p580 = pneg %p157
        $region62: #{tpu_custom_call.1} parent=59 // pred_check_branch
          %582 = sbr.rel (%p580) target = $region64
        $region63: #{tpu_custom_call.1} parent=59 // pred_region
          %s583 = sand.u32 %s142, 1
          %s584 = scalar_lea.sflag [#allocation4], %s583
          %s585 = sand.u32 %s142, 1
          %s586 = smul.addr %s585, 32
          %s587 = scalar_lea.vmem [#allocation8], %s586
          %588 = dma.done %s584, 512
        $region64: #{tpu_custom_call.1} parent=59 // pred_fallthru
          _
      $region60: #{tpu_custom_call.1} parent=5 // pred_fallthru
        _
    $region6: #{tpu_custom_call.1} parent=1 // loop_footer
      %s22 = sadd.s32 1, %s18
    $region7: #{tpu_custom_call.1} parent=1 // loop_footer_branch
      %17 = sbr.rel target = $region3
    $region8: #{tpu_custom_call.1} parent=1 // loop_exit
      _
    %589 = vsyncpa [#allocation3], 1
    %s590 = scalar_lea.sflag [#allocation3], 1
    %591 = vsyncpa %s590, 1
    %592 = vsyncpa [#allocation6], 1
    %593 = vsyncpa [#allocation4], 1
    %s594 = scalar_lea.sflag [#allocation4], 1
    %595 = vsyncpa %s594, 1

</llo_original>
